<compile_context>
chip_gen: v7x
topology: tpu7x:2x2x1
jax: 0.10.0
libtpu: 0.0.40
codegen_flags: <defaults>
</compile_context>

<pallas_src>
from copy import deepcopy as dc

import jax
import jax.numpy as jnp
from jax.experimental import pallas as pl
from jax.experimental.pallas import tpu as pltpu


def gumbel_to_greedy(attn_args):
    # Pure-python config mutation, identical to the PyTorch reference.
    for key in attn_args:
        if attn_args[key] == 'gumbel':
            attn_args[key] = 'greedy'
        elif attn_args[key] == 'ent-gumbel':
            attn_args[key] = 'greedy'
    return attn_args


def _round_up(x, m):
    return (x + m - 1) // m * m


# ---------------------------------------------------------------------------
# Encoder kernel:  feats = tanh(x @ W_enc + b_enc), tiled over rows.
# ---------------------------------------------------------------------------
def _encoder_kernel(x_ref, w_ref, b_ref, out_ref):
    h = jnp.tanh(
        jnp.dot(x_ref[...], w_ref[...], preferred_element_type=jnp.float32)
        + b_ref[...]
    )
    out_ref[...] = h.astype(out_ref.dtype)


def encoder_features_pallas(x_rows, w, b, *, row_tile=None):
    """x_rows: (R, D) -> tanh(x @ w + b) as (R, D) float32."""
    R, D = x_rows.shape
    if row_tile is None:
        row_tile = 256 if R >= 256 else 8
    R_pad = _round_up(R, row_tile)

    x_p = jnp.pad(x_rows, ((0, R_pad - R), (0, 0))).astype(jnp.bfloat16)
    w_b = w.astype(jnp.bfloat16)
    b_f = b.astype(jnp.float32)

    out = pl.pallas_call(
        _encoder_kernel,
        out_shape=jax.ShapeDtypeStruct((R_pad, D), jnp.float32),
        grid_spec=pltpu.PrefetchScalarGridSpec(
            num_scalar_prefetch=0,
            grid=(R_pad // row_tile,),
            in_specs=[
                pl.BlockSpec((row_tile, D), lambda i: (i, 0)),  # x rows
                pl.BlockSpec((D, D), lambda i: (0, 0)),         # W_enc (resident)
                pl.BlockSpec((1, D), lambda i: (0, 0)),         # b_enc
            ],
            out_specs=pl.BlockSpec((row_tile, D), lambda i: (i, 0)),
        ),
        compiler_params=pltpu.CompilerParams(
            dimension_semantics=("parallel",),
        ),
        cost_estimate=pl.CostEstimate(
            flops=2 * R_pad * D * D,
            transcendentals=R_pad * D,
            bytes_accessed=R_pad * D * 2 + D * D * 2 + D * 4 + R_pad * D * 4,
        ),
    )(x_p, w_b, b_f)
    return out[:R]


# ---------------------------------------------------------------------------
# Decoder kernel, tiled over (row tiles, vocab tiles):
#   h      = tanh(x @ W_h + b_h)      computed once per row tile (vocab j == 0)
#   logits = h @ W_out[:, j*tn:(j+1)*tn] + b_out[j*tn:(j+1)*tn]
# ---------------------------------------------------------------------------
def _decoder_kernel(x_ref, wh_ref, bh_ref, wo_ref, bo_ref, out_ref, h_ref):
    @pl.when(pl.program_id(1) == 0)
    def _():
        h = jnp.tanh(
            jnp.dot(x_ref[...], wh_ref[...], preferred_element_type=jnp.float32)
            + bh_ref[...]
        )
        h_ref[...] = h.astype(h_ref.dtype)

    logits = (
        jnp.dot(h_ref[...], wo_ref[...], preferred_element_type=jnp.float32)
        + bo_ref[...]
    )
    out_ref[...] = logits.astype(out_ref.dtype)


def decoder_forward_pallas(x_rows, w_h, b_h, w_out, b_out,
                           *, row_tile=None, vocab_tile=None):
    """x_rows: (R, D) -> logits (R, V) in bfloat16 (fp32 accumulation)."""
    R, D = x_rows.shape
    V = w_out.shape[1]

    if row_tile is None:
        row_tile = 256 if R >= 256 else 8
    R_pad = _round_up(R, row_tile)

    V_pad = _round_up(V, 128)
    if vocab_tile is None:
        vocab_tile = 512 if (V_pad >= 1024 and V_pad % 512 == 0) else 128
    V_pad = _round_up(V_pad, vocab_tile)

    n_row = R_pad // row_tile
    n_voc = V_pad // vocab_tile

    # bf16 inputs for the MXU; fp32 biases for the epilogue.
    x_p = jnp.pad(x_rows, ((0, R_pad - R), (0, 0))).astype(jnp.bfloat16)
    w_h_b = w_h.astype(jnp.bfloat16)
    b_h_f = b_h.astype(jnp.float32)
    w_out_b = jnp.pad(w_out, ((0, 0), (0, V_pad - V))).astype(jnp.bfloat16)
    b_out_f = jnp.pad(b_out, ((0, 0), (0, V_pad - V))).astype(jnp.float32)

    # Per-step VMEM footprint (double-buffered tiles + h scratch) -> explicit limit.
    tile_bytes = (
        row_tile * D * 2          # x tile (bf16)
        + D * D * 2               # W_h (bf16, resident)
        + D * 4                   # b_h (f32)
        + D * vocab_tile * 2      # W_out tile (bf16)
        + vocab_tile * 4          # b_out tile (f32)
        + row_tile * vocab_tile * 2  # out tile (bf16)
    )
    vmem_limit = min(max(2 * tile_bytes + row_tile * D * 2 + (2 << 20), 16 << 20),
                     100 << 20)

    cost = pl.CostEstimate(
        flops=2 * R_pad * D * D + 2 * R_pad * D * V_pad,
        transcendentals=R_pad * D,
        bytes_accessed=(R_pad * D * 2 + D * D * 2 + D * 4
                        + n_row * (D * V_pad * 2 + V_pad * 4)
                        + R_pad * V_pad * 2),
    )

    logits = pl.pallas_call(
        _decoder_kernel,
        out_shape=jax.ShapeDtypeStruct((R_pad, V_pad), jnp.bfloat16),
        grid_spec=pltpu.PrefetchScalarGridSpec(
            num_scalar_prefetch=0,
            grid=(n_row, n_voc),
            in_specs=[
                pl.BlockSpec((row_tile, D), lambda i, j: (i, 0)),      # x rows
                pl.BlockSpec((D, D), lambda i, j: (0, 0)),             # W_h
                pl.BlockSpec((1, D), lambda i, j: (0, 0)),             # b_h
                pl.BlockSpec((D, vocab_tile), lambda i, j: (0, j)),    # W_out tile
                pl.BlockSpec((1, vocab_tile), lambda i, j: (0, j)),    # b_out tile
            ],
            out_specs=pl.BlockSpec((row_tile, vocab_tile), lambda i, j: (i, j)),
            scratch_shapes=[pltpu.VMEM((row_tile, D), jnp.bfloat16)],  # h reuse
        ),
        compiler_params=pltpu.CompilerParams(
            dimension_semantics=("parallel", "arbitrary"),
            vmem_limit_bytes=int(vmem_limit),
        ),
        cost_estimate=cost,
    )(x_p, w_h_b, b_h_f, w_out_b, b_out_f)

    return logits[:R, :V]


# ---------------------------------------------------------------------------
# Synthetic encoder / decoder parameters (the fairseq ones are abstract).
# ---------------------------------------------------------------------------
class SimpleEncoderParams:
    def __init__(self, key, vocab, embed_dim):
        k0, k1 = jax.random.split(key)
        self.vocab = vocab
        self.embed_dim = embed_dim
        # Weights kept in bf16 (native MXU input); biases in fp32.
        self.embed_tokens = (jax.random.normal(k0, (vocab, embed_dim), jnp.float32)
                             * 0.02).astype(jnp.bfloat16)
        self.w = (jax.random.normal(k1, (embed_dim, embed_dim), jnp.float32)
                  * 0.05).astype(jnp.bfloat16)
        self.b = jnp.zeros((1, embed_dim), jnp.float32)


class SimpleDecoderParams:
    def __init__(self, key, vocab, embed_dim):
        k0, k1, k2 = jax.random.split(key, 3)
        self.vocab = vocab
        self.embed_dim = embed_dim
        self.embed_tokens = (jax.random.normal(k0, (vocab, embed_dim), jnp.float32)
                             * 0.02).astype(jnp.bfloat16)
        self.w_h = (jax.random.normal(k1, (embed_dim, embed_dim), jnp.float32)
                    * 0.05).astype(jnp.bfloat16)
        self.b_h = jnp.zeros((1, embed_dim), jnp.float32)
        self.w_out = (jax.random.normal(k2, (embed_dim, vocab), jnp.float32)
                      * 0.05).astype(jnp.bfloat16)
        self.b_out = jnp.zeros((1, vocab), jnp.float32)


class Args:
    def __init__(self):
        self.encoder_mode = 'gumbel'
        self.encoder_temperature = 1.0
        self.decoder_mode = 'ent-gumbel'
        self.decoder_temperature = 2.0
        self.enc_dec_mode = 'greedy'
        self.enc_dec_temperature = 1.0


class FairseqEncoderDecoderModelPallas:
    """Encoder-decoder model matching FairseqEncoderDecoderModel.forward semantics."""

    def __init__(self, encoder_params, decoder_params, args):
        self.encoder = encoder_params
        self.decoder = decoder_params
        self.attn_args = {
            'encoder_mode': args.encoder_mode,
            'encoder_temperature': args.encoder_temperature,
            'decoder_mode': args.decoder_mode,
            'decoder_temperature': args.decoder_temperature,
            'enc_dec_mode': args.enc_dec_mode,
            'enc_dec_temperature': args.enc_dec_temperature,
        }
        self.training = False  # eval mode, as after make_generation_fast_()

    # --- encoder ---------------------------------------------------------
    def _encode(self, src_tokens, src_lengths):
        B, Ts = src_tokens.shape
        D = self.encoder.embed_dim
        # TODO(synk): fuse the embedding gather into the kernel via
        # PrefetchScalarGridSpec(num_scalar_prefetch=1) + a pl.Element row-gather spec.
        emb = jnp.take(self.encoder.embed_tokens, src_tokens, axis=0)  # (B, Ts, D) bf16
        feats = encoder_features_pallas(emb.reshape(B * Ts, D),
                                        self.encoder.w, self.encoder.b)
        feats = feats.reshape(B, Ts, D)                                 # fp32
        mask = (jnp.arange(Ts)[None, :] < src_lengths[:, None]).astype(jnp.float32)
        denom = jnp.maximum(src_lengths.astype(jnp.float32), 1.0)[:, None]
        context = (feats * mask[..., None]).sum(axis=1) / denom         # (B, D) fp32
        return context

    # --- decoder ---------------------------------------------------------
    def _decode(self, prev_output_tokens, encoder_out):
        B, Tt = prev_output_tokens.shape
        D = self.decoder.embed_dim
        V = self.decoder.vocab
        emb = jnp.take(self.decoder.embed_tokens, prev_output_tokens,
                       axis=0).astype(jnp.float32)                      # (B, Tt, D)
        x = emb + encoder_out[:, None, :]                               # add enc context
        logits_rows = decoder_forward_pallas(
            x.reshape(B * Tt, D),
            self.decoder.w_h, self.decoder.b_h,
            self.decoder.w_out, self.decoder.b_out,
        )
        return logits_rows.reshape(B, Tt, V)

    # --- forward (matches the reference signature/semantics) -------------
    def forward(self, src_tokens, src_lengths, prev_output_tokens, **kwargs):
        attn_args = dc(self.attn_args)
        if not self.training:
            attn_args = gumbel_to_greedy(attn_args)
        kwargs.update(attn_args)
        # attn_args only select sampling modes for the (synthetic) modules; the
        # deterministic 'greedy' path is what gets computed below.
        encoder_out = self._encode(src_tokens, src_lengths)
        logits = self._decode(prev_output_tokens, encoder_out)
        return logits, {'attn_args': kwargs, 'encoder_out': encoder_out}

    def get_normalized_probs(self, net_output, log_probs):
        logits = net_output[0].astype(jnp.float32)   # upcast bf16 logits
        if log_probs:
            return jax.nn.log_softmax(logits, axis=-1)
        return jax.nn.softmax(logits, axis=-1)


if __name__ == "__main__":
    key = jax.random.PRNGKey(0)
    k_enc, k_dec, k_src, k_prev, k_len = jax.random.split(key, 5)

    batch, src_len, tgt_len = 2, 8, 8
    vocab, embed_dim = 256, 128   # vocab multiple of 128 -> lane-dense output tiles

    enc_params = SimpleEncoderParams(k_enc, vocab, embed_dim)
    dec_params = SimpleDecoderParams(k_dec, vocab, embed_dim)
    model = FairseqEncoderDecoderModelPallas(enc_params, dec_params, Args())

    src_tokens = jax.random.randint(k_src, (batch, src_len), 0, vocab, jnp.int32)
    prev_output_tokens = jax.random.randint(k_prev, (batch, tgt_len), 0, vocab, jnp.int32)
    src_lengths = jnp.array([src_len, src_len - 3], jnp.int32)

    logits, extra = model.forward(src_tokens, src_lengths, prev_output_tokens)
    logits = jax.block_until_ready(logits)

    # ---------------- reference in plain JAX (same bf16 params) ----------------
    src_emb = jnp.take(enc_params.embed_tokens, src_tokens, axis=0)
    feats_ref = jnp.tanh(
        jnp.dot(src_emb.reshape(batch * src_len, embed_dim), enc_params.w,
                preferred_element_type=jnp.float32) + enc_params.b
    ).reshape(batch, src_len, embed_dim)
    mask = (jnp.arange(src_len)[None, :] < src_lengths[:, None]).astype(jnp.float32)
    ctx_ref = (feats_ref * mask[..., None]).sum(1) / jnp.maximum(
        src_lengths.astype(jnp.float32), 1.0)[:, None]

    tgt_emb = jnp.take(dec_params.embed_tokens, prev_output_tokens, axis=0).astype(jnp.float32)
    x_ref = (tgt_emb + ctx_ref[:, None, :]).reshape(batch * tgt_len, embed_dim).astype(jnp.bfloat16)
    h_ref = jnp.tanh(
        jnp.dot(x_ref, dec_params.w_h, preferred_element_type=jnp.float32) + dec_params.b_h
    ).astype(jnp.bfloat16)
    logits_ref = (
        jnp.dot(h_ref, dec_params.w_out, preferred_element_type=jnp.float32) + dec_params.b_out
    ).astype(jnp.bfloat16).reshape(batch, tgt_len, vocab)

    assert logits.shape == (batch, tgt_len, vocab)
    assert logits.dtype == jnp.bfloat16
    assert extra['attn_args']['encoder_mode'] == 'greedy'      # gumbel -> greedy in eval
    assert extra['attn_args']['decoder_mode'] == 'greedy'      # ent-gumbel -> greedy in eval
    assert extra['attn_args']['enc_dec_mode'] == 'greedy'
    assert jnp.allclose(logits.astype(jnp.float32), logits_ref.astype(jnp.float32),
                        atol=5e-2, rtol=5e-2)

    # probs path (upcasts bf16 -> fp32 before softmax)
    probs = model.get_normalized_probs((logits, extra), log_probs=False)
    assert jnp.allclose(probs.sum(-1), jnp.ones((batch, tgt_len)), atol=1e-3)

    print("KERNEL_OK")
</pallas_src>

<mosaic_0001>
module attributes {stable_mosaic.version = 11 : i64} {
  func.func @_encoder_kernel(%arg0: i32, %arg1: memref<8x128xbf16, #tpu.memory_space<vmem>>, %arg2: memref<128x128xbf16, #tpu.memory_space<vmem>>, %arg3: memref<1x128xf32, #tpu.memory_space<vmem>>, %arg4: memref<8x128xf32, #tpu.memory_space<vmem>>) attributes {dimension_semantics = [#tpu.dimension_semantics<parallel>], iteration_bounds = array<i64: 2>, scalar_prefetch = 0 : i64, scratch_operands = 0 : i64, tpu.core_type = #tpu.core_type<tc>, window_params = [{transform_indices = @transform_0, window_bounds = array<i64: 8, 128>}, {pipeline_mode = #tpu.pipeline_mode<synchronous>, transform_indices = @transform_1, window_bounds = array<i64: 128, 128>}, {pipeline_mode = #tpu.pipeline_mode<synchronous>, transform_indices = @transform_2, window_bounds = array<i64: 1, 128>}, {transform_indices = @transform_3, window_bounds = array<i64: 8, 128>}]} {
    %c0 = arith.constant 0 : index
    %c0_0 = arith.constant 0 : index
    %0 = vector.load %arg1[%c0, %c0_0] : memref<8x128xbf16, #tpu.memory_space<vmem>>, vector<8x128xbf16>
    %c0_1 = arith.constant 0 : index
    %c0_2 = arith.constant 0 : index
    %1 = vector.load %arg2[%c0_1, %c0_2] : memref<128x128xbf16, #tpu.memory_space<vmem>>, vector<128x128xbf16>
    %cst = arith.constant dense<0.000000e+00> : vector<8x128xf32>
    %2 = tpu.matmul %0, %1, %cst {dimension_numbers = #tpu.dot_dimension_numbers<[1], [0], [0], [1], [0, 0, 1, 1], [], []>} : vector<8x128xbf16>, vector<128x128xbf16>, vector<8x128xf32> -> vector<8x128xf32>
    %c0_3 = arith.constant 0 : index
    %c0_4 = arith.constant 0 : index
    %3 = vector.load %arg3[%c0_3, %c0_4] : memref<1x128xf32, #tpu.memory_space<vmem>>, vector<1x128xf32>
    %4 = vector.broadcast %3 : vector<1x128xf32> to vector<8x128xf32>
    %5 = arith.addf %2, %4 : vector<8x128xf32>
    %6 = math.tanh %5 : vector<8x128xf32>
    %c0_5 = arith.constant 0 : index
    %c0_6 = arith.constant 0 : index
    %7 = vector.load %arg4[%c0_5, %c0_6] : memref<8x128xf32, #tpu.memory_space<vmem>>, vector<8x128xf32>
    tpu.vector_store %arg4[%c0_5, %c0_6], %6 {strides = array<i32>} : memref<8x128xf32, #tpu.memory_space<vmem>>, vector<8x128xf32>,
    return
  }
  func.func @transform_0(%arg0: i32) -> (i32, i32) {
    %c0_i32 = arith.constant 0 : i32
    %c0_i32_0 = arith.constant 0 : i32
    return %arg0, %c0_i32 : i32, i32
  }
  func.func @transform_1(%arg0: i32) -> (i32, i32) {
    %c0_i32 = arith.constant 0 : i32
    %c0_i32_0 = arith.constant 0 : i32
    %c0_i32_1 = arith.constant 0 : i32
    return %c0_i32, %c0_i32_0 : i32, i32
  }
  func.func @transform_2(%arg0: i32) -> (i32, i32) {
    %c0_i32 = arith.constant 0 : i32
    %c0_i32_0 = arith.constant 0 : i32
    %c0_i32_1 = arith.constant 0 : i32
    return %c0_i32, %c0_i32_0 : i32, i32
  }
  func.func @transform_3(%arg0: i32) -> (i32, i32) {
    %c0_i32 = arith.constant 0 : i32
    %c0_i32_0 = arith.constant 0 : i32
    return %arg0, %c0_i32 : i32, i32
  }
}

</mosaic_0001>

<llo_original>
// kernel: tpu_custom_call.1
$region0: #{tpu_custom_call.1}
  #allocation0 [shape = 'u32[]', space=smem, size = 0x4, offset = 0x4, fixed_abs, tag = 'smem constant byte address 0x4 - core index']
  #allocation1 [shape = 'u32[144,128]{1,0:T(1,128)}', space=vmem, size = 0x12000, scoped, tag = 'internal scratch']
  %s0 = inlined_call_operand.hbm [shape: bf16[16,128], index: 0, kind: input, shape index: {}]
  %s1 = inlined_call_operand.hbm [shape: bf16[128,128], index: 1, kind: input, shape index: {}]
  %s2 = inlined_call_operand.vmem [shape: f32[1,128], index: 2, kind: input, shape index: {}]
  %s3 = inlined_call_operand.hbm [shape: f32[16,128], index: 3, kind: output, shape index: {}]
  %s4 = sld [smem:[#allocation0]]
  $region53: #{tpu_custom_call.1} parent=0
    _
  %s6 = ssub.s32 1, %s4
  %s7 = scalar_select 0, %s6, %s4
  $region1: #{tpu_custom_call.1} parent=0
    #allocation2 [shape = 'u8[4096]{0}', space=vmem, size = 0x1000, scoped, tag = 'input window, operand 0']
    #allocation3 [shape = 's32[2]{0}', space=sflag, size = 0x8, scoped, tag = 'scoped memory for tpu_custom_call.1']
    #allocation4 [shape = 's32[2]{0}', space=sflag, size = 0x8, scoped, tag = 'scoped memory for tpu_custom_call.1']
    #allocation5 [shape = 'u8[32768]{0}', space=vmem, size = 0x8000, scoped, tag = 'input window, operand 1, single buffered']
    #allocation6 [shape = 's32[1]{0}', space=sflag, size = 0x4, scoped, tag = 'scoped memory for tpu_custom_call.1']
    #allocation7 [shape = 'u8[8192]{0}', space=vmem, size = 0x2000, scoped, tag = 'output window, operand 0']
    %8 = vsyncpa [#allocation3], 0
    %s9 = scalar_lea.sflag [#allocation3], 1
    %10 = vsyncpa %s9, 0
    %11 = vsyncpa [#allocation6], 0
    %12 = vsyncpa [#allocation4], 0
    %s13 = scalar_lea.sflag [#allocation4], 1
    %14 = vsyncpa %s13, 0
    loop: start=0, step=1, limit=4
    $region2: #{tpu_custom_call.1} parent=1 // loop_pre_header
      _
    $region3: #{tpu_custom_call.1} parent=1 // loop_header
      %s16 = sphi 0, %s20
      %p17 = scmp.ge.s32.totalorder %s16, 4
      %s26 = sphi 0, %s28
      %s29 = sphi 0, %s26
      %s30 = sphi 0, %s29
      %s46 = sphi 0, %s30
      %s50 = sphi 0, %s50
      %s52 = sphi 0, %s50
      %s53 = sphi 0, %s52
      %s67 = sphi 0, %s53
      %s71 = sphi 0, %s71
      %s73 = sphi 0, %s71
      %s74 = sphi 0, %s73
      %s88 = sphi 0, %s74
      %s94 = sphi 0, %s96
      %s97 = sphi 0, %s94
      %s98 = sphi 0, %s97
      %s114 = sphi 0, %s98
    $region4: #{tpu_custom_call.1} parent=1 // loop_header_branch
      %19 = sbr.rel (%p17) target = $region8
    $region5: #{tpu_custom_call.1} parent=1 // loop_body
      %s21 = ssub.s32 %s16, 1
      %s22 = ssub.s32 %s16, 2
      %s23 = sadd.s32 %s16, 1
      %s24 = ssub.s32 %s16, %s23
      %p25 = scmp.eq.s32.totalorder %s24, 0
      %s27 = sadd.s32 %s26, 1
      %s28 = scalar_select %p25, %s26, %s27
      %p31 = pneg %p25
      %p32 = scmp.eq.s32.totalorder %s16, 1
      %p33 = por %p31, %p32
      %p34 = scmp.ne.s32.totalorder %s26, %s29
      %p35 = scmp.eq.s32.totalorder %s16, 0
      %p36 = por %p34, %p35
      %p37 = scmp.ne.s32.totalorder %s26, %s29
      %p38 = scmp.eq.s32.totalorder %s21, 1
      %p39 = por %p37, %p38
      %p40 = scmp.ne.s32.totalorder %s29, %s30
      %p41 = scmp.eq.s32.totalorder %s21, 0
      %p42 = por %p40, %p41
      %p43 = scmp.ne.s32.totalorder %s29, %s30
      %p44 = scmp.eq.s32.totalorder %s22, 1
      %p45 = por %p43, %p44
      %p47 = scmp.ne.s32.totalorder %s30, %s46
      %p48 = scmp.eq.s32.totalorder %s22, 0
      %p49 = por %p47, %p48
      %s51 = sadd.s32 %s50, 1
      %p54 = scmp.eq.s32.totalorder %s16, 1
      %p55 = scmp.ne.s32.totalorder %s50, %s52
      %p56 = scmp.eq.s32.totalorder %s16, 0
      %p57 = por %p55, %p56
      %p58 = scmp.ne.s32.totalorder %s50, %s52
      %p59 = scmp.eq.s32.totalorder %s21, 1
      %p60 = por %p58, %p59
      %p61 = scmp.ne.s32.totalorder %s52, %s53
      %p62 = scmp.eq.s32.totalorder %s21, 0
      %p63 = por %p61, %p62
      %p64 = scmp.ne.s32.totalorder %s52, %s53
      %p65 = scmp.eq.s32.totalorder %s22, 1
      %p66 = por %p64, %p65
      %p68 = scmp.ne.s32.totalorder %s53, %s67
      %p69 = scmp.eq.s32.totalorder %s22, 0
      %p70 = por %p68, %p69
      %s72 = sadd.s32 %s71, 1
      %p75 = scmp.eq.s32.totalorder %s16, 1
      %p76 = scmp.ne.s32.totalorder %s71, %s73
      %p77 = scmp.eq.s32.totalorder %s16, 0
      %p78 = por %p76, %p77
      %p79 = scmp.ne.s32.totalorder %s71, %s73
      %p80 = scmp.eq.s32.totalorder %s21, 1
      %p81 = por %p79, %p80
      %p82 = scmp.ne.s32.totalorder %s73, %s74
      %p83 = scmp.eq.s32.totalorder %s21, 0
      %p84 = por %p82, %p83
      %p85 = scmp.ne.s32.totalorder %s73, %s74
      %p86 = scmp.eq.s32.totalorder %s22, 1
      %p87 = por %p85, %p86
      %p89 = scmp.ne.s32.totalorder %s74, %s88
      %p90 = scmp.eq.s32.totalorder %s22, 0
      %p91 = por %p89, %p90
      %s92 = ssub.s32 %s16, %s23
      %p93 = scmp.eq.s32.totalorder %s92, 0
      %s95 = sadd.s32 %s94, 1
      %s96 = scalar_select %p93, %s94, %s95
      %p99 = pneg %p93
      %p100 = scmp.eq.s32.totalorder %s16, 1
      %p101 = por %p99, %p100
      %p102 = scmp.ne.s32.totalorder %s94, %s97
      %p103 = scmp.eq.s32.totalorder %s16, 0
      %p104 = por %p102, %p103
      %p105 = scmp.ne.s32.totalorder %s94, %s97
      %p106 = scmp.eq.s32.totalorder %s21, 1
      %p107 = por %p105, %p106
      %p108 = scmp.ne.s32.totalorder %s97, %s98
      %p109 = scmp.eq.s32.totalorder %s21, 0
      %p110 = por %p108, %p109
      %p111 = scmp.ne.s32.totalorder %s97, %s98
      %p112 = scmp.eq.s32.totalorder %s22, 1
      %p113 = por %p111, %p112
      %p115 = scmp.ne.s32.totalorder %s98, %s114
      %p116 = scmp.eq.s32.totalorder %s22, 0
      %p117 = por %p115, %p116
      %p118 = scmp.le.s32.totalorder 1, %s16
      %p119 = scmp.lt.s32.totalorder %s16, 3
      %p120 = pnand %p118, %p119
      %p121 = pneg %p120
      // Predicated region
      $region9: #{tpu_custom_call.1} parent=5 // pred_check
        _
      $region10: #{tpu_custom_call.1} parent=5 // pred_check_branch
        %123 = sbr.rel (%p120) target = $region12
      $region11: #{tpu_custom_call.1} parent=5 // pred_region
        %s124 = ssub.s32 %s16, 1
        // Predicated region
        $region13: #{tpu_custom_call.1} parent=11 // pred_check
          %p125 = pneg %p63
        $region14: #{tpu_custom_call.1} parent=11 // pred_check_branch
          %127 = sbr.rel (%p125) target = $region16
        $region15: #{tpu_custom_call.1} parent=11 // pred_region
          %s129 = ssub.s32 1024, 1024
          %130 = vsyncadd [#allocation6], %s129
          %s131 = sshll.u32 [#allocation5], 4
          %s132 = int_to_ptr.vmem [resolvable:$true] %s131
          %137 = dma.hbm_to_vmem [thread:$0]  %s1, 1024, %s132, [#allocation6], 64, 64, 4
        $region16: #{tpu_custom_call.1} parent=11 // pred_fallthru
          _
        // Predicated region
        $region17: #{tpu_custom_call.1} parent=11 // pred_check
          %p138 = pneg %p84
        $region18: #{tpu_custom_call.1} parent=11 // pred_check_branch
          %140 = sbr.rel (%p138) target = $region20
        $region19: #{tpu_custom_call.1} parent=11 // pred_region
          _
        $region20: #{tpu_custom_call.1} parent=11 // pred_fallthru
          _
      $region12: #{tpu_custom_call.1} parent=5 // pred_fallthru
        _
      %p141 = scmp.lt.s32.totalorder %s16, 2
      // Predicated region
      $region21: #{tpu_custom_call.1} parent=5 // pred_check
        %p142 = pneg %p141
      $region22: #{tpu_custom_call.1} parent=5 // pred_check_branch
        %144 = sbr.rel (%p142) target = $region24
      $region23: #{tpu_custom_call.1} parent=5 // pred_region
        // Predicated region
        $region25: #{tpu_custom_call.1} parent=23 // pred_check
          %p145 = pneg %p36
        $region26: #{tpu_custom_call.1} parent=23 // pred_check_branch
          %147 = sbr.rel (%p145) target = $region28
        $region27: #{tpu_custom_call.1} parent=23 // pred_region
          %s148 = sand.u32 %s26, 1
          %s149 = scalar_lea.sflag [#allocation3], %s148
          %s150 = sand.u32 %s26, 1
          %s151 = smul.addr %s150, 4
          %s152 = scalar_lea.vmem [#allocation2], %s151
          %s154 = ssub.s32 64, 64
          %155 = vsyncadd %s149, %s154
          %s156 = smul.addr %s16, 64
          %s157 = scalar_lea.hbm %s0, %s156
          %s159 = sshll.u32 %s152, 4
          %s160 = int_to_ptr.vmem [resolvable:$true] %s159
          %162 = dma.hbm_to_vmem [thread:$0]  %s157, 64, %s160, %s149
        $region28: #{tpu_custom_call.1} parent=23 // pred_fallthru
          _
      $region24: #{tpu_custom_call.1} parent=5 // pred_fallthru
        _
      %p163 = scmp.le.s32.totalorder 1, %s16
      %p164 = scmp.lt.s32.totalorder %s16, 3
      %p165 = pnand %p163, %p164
      %p166 = pneg %p165
      // Predicated region
      $region29: #{tpu_custom_call.1} parent=5 // pred_check
        _
      $region30: #{tpu_custom_call.1} parent=5 // pred_check_branch
        %168 = sbr.rel (%p165) target = $region32
      $region31: #{tpu_custom_call.1} parent=5 // pred_region
        %s169 = ssub.s32 %s16, 1
        %s170 = sand.u32 %s29, 1
        %s171 = scalar_lea.sflag [#allocation3], %s170
        %s172 = sand.u32 %s29, 1
        %s173 = smul.addr %s172, 4
        %s174 = scalar_lea.vmem [#allocation2], %s173
        // Predicated region
        $region33: #{tpu_custom_call.1} parent=31 // pred_check
          %p175 = pneg %p42
        $region34: #{tpu_custom_call.1} parent=31 // pred_check_branch
          %177 = sbr.rel (%p175) target = $region36
        $region35: #{tpu_custom_call.1} parent=31 // pred_region
          %178 = dma.done %s171, 64
        $region36: #{tpu_custom_call.1} parent=31 // pred_fallthru
          _
        // Predicated region
        $region37: #{tpu_custom_call.1} parent=31 // pred_check
          %p179 = pneg %p63
        $region38: #{tpu_custom_call.1} parent=31 // pred_check_branch
          %181 = sbr.rel (%p179) target = $region40
        $region39: #{tpu_custom_call.1} parent=31 // pred_region
          %182 = dma.done [#allocation6], 1024
        $region40: #{tpu_custom_call.1} parent=31 // pred_fallthru
          _
        %s183 = sand.u32 %s29, 1
        %s184 = scalar_lea.sflag [#allocation3], %s183
        %s185 = sand.u32 %s29, 1
        %s186 = smul.addr %s185, 4
        %s187 = scalar_lea.vmem [#allocation2], %s186
        %p188 = pneg %p42
        %p189 = pneg %p39
        %p190 = pneg %p63
        %p191 = pneg %p60
        %p192 = pneg %p84
        %p193 = pneg %p81
        %p194 = pneg %p110
        %p195 = pneg %p107
        %s196 = sand.u32 %s97, 1
        %s197 = scalar_lea.sflag [#allocation4], %s196
        %s198 = sand.u32 %s97, 1
        %s199 = smul.addr %s198, 8
        %s200 = scalar_lea.vmem [#allocation7], %s199
        %v202 = vld [vmem:[%s174] sm:$0xf]
        %v203 = vld [vmem:[#allocation5] sm:$0xf]
        %v204 = vld [vmem:[#allocation5 + $0x4] sm:$0xf]
        %v205 = vld [vmem:[#allocation5 + $0x8] sm:$0xf]
        %v206 = vld [vmem:[#allocation5 + $0xc] sm:$0xf]
        %v207 = vld [vmem:[#allocation5 + $0x10] sm:$0xf]
        %v208 = vld [vmem:[#allocation5 + $0x14] sm:$0xf]
        %v209 = vld [vmem:[#allocation5 + $0x18] sm:$0xf]
        %v210 = vld [vmem:[#allocation5 + $0x1c] sm:$0xf]
        %v211 = vld [vmem:[#allocation5 + $0x20] sm:$0xf]
        %v212 = vld [vmem:[#allocation5 + $0x24] sm:$0xf]
        %v213 = vld [vmem:[#allocation5 + $0x28] sm:$0xf]
        %v214 = vld [vmem:[#allocation5 + $0x2c] sm:$0xf]
        %v215 = vld [vmem:[#allocation5 + $0x30] sm:$0xf]
        %v216 = vld [vmem:[#allocation5 + $0x34] sm:$0xf]
        %v217 = vld [vmem:[#allocation5 + $0x38] sm:$0xf]
        %v218 = vld [vmem:[#allocation5 + $0x3c] sm:$0xf]
        %v219 = vld [vmem:[%s2] sm:$0x1]
        %v221 = vlaneseq
        %v222 = vshrl.u32 %v221, 7
        %v223 = vsub.s32 0, %v222
        %v224 = vrot.slane %v219, %v223
        %v242 = vunpack.c.l.b16 %v203
        %v243 = vunpack.c.l.b16 %v204
        %v244 = vunpack.c.l.b16 %v205
        %v245 = vunpack.c.l.b16 %v206
        %v246 = vunpack.c.l.b16 %v207
        %v247 = vunpack.c.l.b16 %v208
        %v248 = vunpack.c.l.b16 %v209
        %v249 = vunpack.c.l.b16 %v210
        %v250 = vunpack.c.l.b16 %v211
        %v251 = vunpack.c.l.b16 %v212
        %v252 = vunpack.c.l.b16 %v213
        %v253 = vunpack.c.l.b16 %v214
        %v254 = vunpack.c.l.b16 %v215
        %v255 = vunpack.c.l.b16 %v216
        %v256 = vunpack.c.l.b16 %v217
        %v257 = vunpack.c.l.b16 %v218
        %v258 = vpack.c.b16 %v243, %v242
        %v259 = vpack.c.b16 %v245, %v244
        %v260 = vpack.c.b16 %v247, %v246
        %v261 = vpack.c.b16 %v249, %v248
        %v262 = vpack.c.b16 %v251, %v250
        %v263 = vpack.c.b16 %v253, %v252
        %v264 = vpack.c.b16 %v255, %v254
        %v265 = vpack.c.b16 %v257, %v256
        %274 = vmatprep.subr.bf16.mxu0 0
        %275 = vmatpush1.bf16.msra.mxu0 %v258
        %276 = vmatprep.subr.bf16.mxu0 0
        %277 = vmatpush1.bf16.msra.mxu0 %v259
        %278 = vmatprep.subr.bf16.mxu0 0
        %279 = vmatpush1.bf16.msra.mxu0 %v260
        %280 = vmatprep.subr.bf16.mxu0 0
        %281 = vmatpush1.bf16.msra.mxu0 %v261
        %282 = vmatprep.subr.bf16.mxu0 0
        %283 = vmatpush1.bf16.msra.mxu0 %v262
        %284 = vmatprep.subr.bf16.mxu0 0
        %285 = vmatpush1.bf16.msra.mxu0 %v263
        %286 = vmatprep.subr.bf16.mxu0 0
        %287 = vmatpush1.bf16.msra.mxu0 %v264
        %288 = vmatprep.subr.bf16.mxu0 0
        %289 = vmatpush1.bf16.msra.mxu0 %v265
        %290 = vmatprep.subr.bf16.mxu0 0
        %291 = vmatpush1.bf16.msra.mxu0 0
        %292 = vmatprep.subr.bf16.mxu0 0
        %293 = vmatpush1.bf16.msra.mxu0 0
        %294 = vmatprep.subr.bf16.mxu0 0
        %295 = vmatpush1.bf16.msra.mxu0 0
        %296 = vmatprep.subr.bf16.mxu0 0
        %297 = vmatpush1.bf16.msra.mxu0 0
        %298 = vmatprep.subr.bf16.mxu0 0
        %299 = vmatpush1.bf16.msra.mxu0 0
        %300 = vmatprep.subr.bf16.mxu0 0
        %301 = vmatpush1.bf16.msra.mxu0 0
        %302 = vmatprep.subr.bf16.mxu0 0
        %303 = vmatpush1.bf16.msra.mxu0 0
        %304 = vmatprep.subr.bf16.mxu0 0
        %305 = vmatpush1.bf16.msra.mxu0 0
        %306 = vmatprep.mubr.bf16.mxu0 0
        %307 = vmatmul.mubr.bf16.gmra.mrb[0].mxu0 %v202
        %v308 = vpop.f32.mrb[0].mxu0
        %v309 = vadd.f32 %v224, %v308
        %v310 = vpop.f32.mrb[0].mxu0
        %v311 = vpop.f32.mrb[0].mxu0
        %v312 = vpop.f32.mrb[0].mxu0
        %313 = vdwg.mxu0
        %v314 = vtanh.pop %v309
        %315 = vst [vmem:[%s200] sm:$0xff] %v314
        %s316 = sand.u32 %s97, 1
        %s317 = scalar_lea.sflag [#allocation4], %s316
        %s318 = sand.u32 %s97, 1
        %s319 = smul.addr %s318, 8
        %s320 = scalar_lea.vmem [#allocation7], %s319
        // Predicated region
        $region41: #{tpu_custom_call.1} parent=31 // pred_check
          %p321 = pneg %p107
        $region42: #{tpu_custom_call.1} parent=31 // pred_check_branch
          %323 = sbr.rel (%p321) target = $region44
        $region43: #{tpu_custom_call.1} parent=31 // pred_region
          %s325 = ssub.s32 128, 128
          %326 = vsyncadd %s317, %s325
          %s327 = smul.addr %s21, 128
          %s328 = scalar_lea.hbm %s3, %s327
          %s330 = sshll.u32 %s320, 4
          %s331 = int_to_ptr.vmem [resolvable:$true] %s330
          %333 = dma.vmem_to_hbm [thread:$0]  %s331, 128, %s328, %s317
        $region44: #{tpu_custom_call.1} parent=31 // pred_fallthru
          _
      $region32: #{tpu_custom_call.1} parent=5 // pred_fallthru
        _
      %p334 = scmp.le.s32.totalorder 2, %s16
      // Predicated region
      $region45: #{tpu_custom_call.1} parent=5 // pred_check
        %p335 = pneg %p334
      $region46: #{tpu_custom_call.1} parent=5 // pred_check_branch
        %337 = sbr.rel (%p335) target = $region48
      $region47: #{tpu_custom_call.1} parent=5 // pred_region
        %s338 = ssub.s32 %s16, 2
        // Predicated region
        $region49: #{tpu_custom_call.1} parent=47 // pred_check
          %p339 = pneg %p113
        $region50: #{tpu_custom_call.1} parent=47 // pred_check_branch
          %341 = sbr.rel (%p339) target = $region52
        $region51: #{tpu_custom_call.1} parent=47 // pred_region
          %s342 = sand.u32 %s98, 1
          %s343 = scalar_lea.sflag [#allocation4], %s342
          %s344 = sand.u32 %s98, 1
          %s345 = smul.addr %s344, 8
          %s346 = scalar_lea.vmem [#allocation7], %s345
          %347 = dma.done %s343, 128
        $region52: #{tpu_custom_call.1} parent=47 // pred_fallthru
          _
      $region48: #{tpu_custom_call.1} parent=5 // pred_fallthru
        _
    $region6: #{tpu_custom_call.1} parent=1 // loop_footer
      %s20 = sadd.s32 1, %s16
    $region7: #{tpu_custom_call.1} parent=1 // loop_footer_branch
      %15 = sbr.rel target = $region3
    $region8: #{tpu_custom_call.1} parent=1 // loop_exit
      _
    %348 = vsyncpa [#allocation3], 1
    %s349 = scalar_lea.sflag [#allocation3], 1
    %350 = vsyncpa %s349, 1
    %351 = vsyncpa [#allocation6], 1
    %352 = vsyncpa [#allocation4], 1
    %s353 = scalar_lea.sflag [#allocation4], 1
    %354 = vsyncpa %s353, 1

</llo_original>
